<compile_context>
chip_gen: v5e
topology: v5e:2x2
jax: 0.10.0
libtpu: 0.0.40
codegen_flags: <defaults>
</compile_context>

<pallas_src>
import functools

import jax
import jax.numpy as jnp
from jax.experimental import pallas as pl
from jax.experimental.pallas import tpu as pltpu

_LANE = 128
_TARGET_ROWS = 2048  # ~1 MiB per f32 input block (2048 x 128 x 4B)


def _row_align(dtype):
    # sublane tiling granularity: f32 -> 8, bf16/f16 -> 16, int8/fp8 -> 32
    return {4: 8, 2: 16, 1: 32}.get(jnp.dtype(dtype).itemsize, 8)


def _mse_kernel(qt_ref, qp_ref, out_ref, acc_ref, *,
                inv_n, tm, n_rows, steps_per_split, needs_mask):
    j = pl.program_id(1)  # reduction ("arbitrary") axis

    @pl.when(j == 0)
    def _():
        acc_ref[...] = jnp.zeros_like(acc_ref)

    d = qp_ref[...].astype(jnp.float32) - qt_ref[...].astype(jnp.float32)

    if needs_mask:
        i = pl.program_id(0)
        row0 = (i * steps_per_split + j) * tm
        row_idx = jax.lax.broadcasted_iota(jnp.int32, (tm, _LANE), 0) + row0
        d = jnp.where(row_idx < n_rows, d, 0.0)

    sq = d * d
    # Lane-preserving partial reduction: (tm, 128) -> (tm//8, 8, 128) -> (8, 128).
    # Pure VPU adds (one per input vreg); no per-step cross-lane XLU reduce.
    acc_ref[...] += jnp.sum(sq.reshape(tm // 8, 8, _LANE), axis=0)

    @pl.when(j == steps_per_split - 1)
    def _():
        out_ref[...] = acc_ref[...] * inv_n


def weighted_mse(q_true, q_pred, episode_len=None, score=None):
    """Pallas equivalent of weighted_MSE.forward (mean-squared-error)."""
    q_true = jnp.asarray(q_true)
    q_pred = jnp.asarray(q_pred)
    if not jnp.issubdtype(q_true.dtype, jnp.floating):
        q_true = q_true.astype(jnp.float32)
    if not jnp.issubdtype(q_pred.dtype, jnp.floating):
        q_pred = q_pred.astype(jnp.float32)
    assert q_true.shape == q_pred.shape, "mse_loss requires matching shapes"

    n_elems = q_true.size
    assert n_elems > 0, "mse_loss of an empty tensor is undefined"

    align = max(_row_align(q_true.dtype), _row_align(q_pred.dtype))

    # Flatten to a (rows, 128) slab. Zero-copy reshape when numel % 128 == 0
    # and rows >= align; otherwise fall back to a small zero-pad (the pad
    # contributes 0 to the squared-diff sum; inv_n uses the true count).
    padded = max(-(-n_elems // _LANE) * _LANE, align * _LANE)
    n_rows = padded // _LANE

    def to_slab(x):
        xf = x.reshape(-1)
        if padded != n_elems:
            # TODO(synk): tail handled by a zero-pad copy; lane-divisible
            # shapes take the zero-copy reshape path.
            xf = jnp.pad(xf, (0, padded - n_elems))
        return xf.reshape(n_rows, _LANE)

    qt2 = to_slab(q_true)
    qp2 = to_slab(q_pred)

    # Block of up to _TARGET_ROWS rows (multiple of the sublane alignment,
    # never larger than the slab). Ragged final block is masked in-kernel.
    tm = min(_TARGET_ROWS, (n_rows // align) * align)
    nsteps = -(-n_rows // tm)
    needs_mask = (n_rows % tm) != 0

    # 2-way core split (v7x megacore) when the step count divides evenly;
    # harmless serial outer loop on single-TC chips.
    nsplits = 2 if (nsteps >= 2 and nsteps % 2 == 0) else 1
    steps = nsteps // nsplits

    kernel = functools.partial(
        _mse_kernel,
        inv_n=1.0 / float(n_elems),
        tm=tm,
        n_rows=n_rows,
        steps_per_split=steps,
        needs_mask=needs_mask,
    )

    in_map = lambda i, j: (i * steps + j, 0)

    out = pl.pallas_call(
        kernel,
        out_shape=jax.ShapeDtypeStruct((nsplits * 8, _LANE), jnp.float32),
        grid_spec=pltpu.PrefetchScalarGridSpec(
            num_scalar_prefetch=0,
            grid=(nsplits, steps),
            in_specs=[
                pl.BlockSpec((tm, _LANE), in_map),
                pl.BlockSpec((tm, _LANE), in_map),
            ],
            out_specs=pl.BlockSpec((8, _LANE), lambda i, j: (i, 0)),
            scratch_shapes=[pltpu.VMEM((8, _LANE), jnp.float32)],
        ),
        compiler_params=pltpu.CompilerParams(
            dimension_semantics=("parallel", "arbitrary"),
            vmem_limit_bytes=32 * 1024 * 1024,
        ),
    )(qt2, qp2)

    # Single, tiny cross-lane reduction (each split already scaled by 1/N).
    return jnp.sum(out)


if __name__ == "__main__":
    key = jax.random.PRNGKey(0)
    k1, k2, k3, k4, k5, k6 = jax.random.split(key, 6)

    # Small Q-value-shaped test: single grid step, block == full slab.
    q_true = jax.random.normal(k1, (2, 4, 16, 16), dtype=jnp.float32)
    q_pred = jax.random.normal(k2, (2, 4, 16, 16), dtype=jnp.float32)
    loss = weighted_mse(q_true, q_pred)
    jax.block_until_ready(loss)
    ref = jnp.mean((q_pred - q_true) ** 2)
    assert jnp.allclose(loss, ref, rtol=1e-6, atol=1e-6), (loss, ref)

    # Medium test: multi-step grid, 2-way parallel split, masked ragged tail.
    a = jax.random.normal(k3, (799232,), dtype=jnp.float32)   # 6244 rows of 128
    b = jax.random.normal(k4, (799232,), dtype=jnp.float32)
    loss2 = weighted_mse(a, b)
    jax.block_until_ready(loss2)
    ref2 = jnp.mean((b - a) ** 2)
    assert jnp.allclose(loss2, ref2, rtol=1e-5, atol=1e-6), (loss2, ref2)

    # Tiny non-lane-divisible test: exercises the zero-pad fallback path.
    c = jax.random.normal(k5, (7, 13), dtype=jnp.float32)
    d = jax.random.normal(k6, (7, 13), dtype=jnp.float32)
    loss3 = weighted_mse(c, d)
    jax.block_until_ready(loss3)
    ref3 = jnp.mean((d - c) ** 2)
    assert jnp.allclose(loss3, ref3, rtol=1e-6, atol=1e-6), (loss3, ref3)

    print("KERNEL_OK")
</pallas_src>

<mosaic_0001>
module attributes {stable_mosaic.version = 11 : i64} {
  func.func @_mse_kernel(%arg0: i32, %arg1: i32, %arg2: memref<16x128xf32, #tpu.memory_space<vmem>>, %arg3: memref<16x128xf32, #tpu.memory_space<vmem>>, %arg4: memref<8x128xf32, #tpu.memory_space<vmem>>, %arg5: memref<8x128xf32, #tpu.memory_space<vmem>>) attributes {dimension_semantics = [#tpu.dimension_semantics<parallel>, #tpu.dimension_semantics<arbitrary>], iteration_bounds = array<i64: 1, 1>, scalar_prefetch = 0 : i64, scratch_operands = 1 : i64, tpu.core_type = #tpu.core_type<tc>, window_params = [{transform_indices = @transform_0, window_bounds = array<i64: 16, 128>}, {transform_indices = @transform_1, window_bounds = array<i64: 16, 128>}, {transform_indices = @transform_2, window_bounds = array<i64: 8, 128>}]} {
    %c0_i32 = arith.constant 0 : i32
    %0 = arith.cmpi eq, %arg1, %c0_i32 : i32
    %1 = arith.extui %0 : i1 to i32
    %c0_i32_0 = arith.constant 0 : i32
    %2 = arith.cmpi ne, %1, %c0_i32_0 : i32
    scf.if %2 {
      %cst_10 = arith.constant 0.000000e+00 : f32
      %15 = vector.broadcast %cst_10 : f32 to vector<8x128xf32>
      %c0_11 = arith.constant 0 : index
      %c0_12 = arith.constant 0 : index
      %16 = vector.load %arg5[%c0_11, %c0_12] : memref<8x128xf32, #tpu.memory_space<vmem>>, vector<8x128xf32>
      tpu.vector_store %arg5[%c0_11, %c0_12], %15 {strides = array<i32>} : memref<8x128xf32, #tpu.memory_space<vmem>>, vector<8x128xf32>,
    } else {
    }
    %c0 = arith.constant 0 : index
    %c0_1 = arith.constant 0 : index
    %3 = vector.load %arg3[%c0, %c0_1] : memref<16x128xf32, #tpu.memory_space<vmem>>, vector<16x128xf32>
    %c0_2 = arith.constant 0 : index
    %c0_3 = arith.constant 0 : index
    %4 = vector.load %arg2[%c0_2, %c0_3] : memref<16x128xf32, #tpu.memory_space<vmem>>, vector<16x128xf32>
    %5 = arith.subf %3, %4 : vector<16x128xf32>
    %6 = arith.mulf %5, %5 : vector<16x128xf32>
    %c0_4 = arith.constant 0 : index
    %c0_5 = arith.constant 0 : index
    %7 = vector.load %arg5[%c0_4, %c0_5] : memref<8x128xf32, #tpu.memory_space<vmem>>, vector<8x128xf32>
    %8 = vector.shape_cast %6 : vector<16x128xf32> to vector<2x8x128xf32>
    %cst = arith.constant dense<0.000000e+00> : vector<8x128xf32>
    %9 = vector.multi_reduction <add>, %8, %cst [0] : vector<2x8x128xf32> to vector<8x128xf32>
    %10 = arith.addf %7, %9 : vector<8x128xf32>
    %c0_6 = arith.constant 0 : index
    %c0_7 = arith.constant 0 : index
    %11 = vector.load %arg5[%c0_6, %c0_7] : memref<8x128xf32, #tpu.memory_space<vmem>>, vector<8x128xf32>
    tpu.vector_store %arg5[%c0_6, %c0_7], %10 {strides = array<i32>} : memref<8x128xf32, #tpu.memory_space<vmem>>, vector<8x128xf32>,
    %c0_i32_8 = arith.constant 0 : i32
    %12 = arith.cmpi eq, %arg1, %c0_i32_8 : i32
    %13 = arith.extui %12 : i1 to i32
    %c0_i32_9 = arith.constant 0 : i32
    %14 = arith.cmpi ne, %13, %c0_i32_9 : i32
    scf.if %14 {
      %c0_10 = arith.constant 0 : index
      %c0_11 = arith.constant 0 : index
      %15 = vector.load %arg5[%c0_10, %c0_11] : memref<8x128xf32, #tpu.memory_space<vmem>>, vector<8x128xf32>
      %cst_12 = arith.constant 4.8828125E-4 : f32
      %16 = vector.broadcast %cst_12 : f32 to vector<8x128xf32>
      %17 = arith.mulf %15, %16 : vector<8x128xf32>
      %c0_13 = arith.constant 0 : index
      %c0_14 = arith.constant 0 : index
      %18 = vector.load %arg4[%c0_13, %c0_14] : memref<8x128xf32, #tpu.memory_space<vmem>>, vector<8x128xf32>
      tpu.vector_store %arg4[%c0_13, %c0_14], %17 {strides = array<i32>} : memref<8x128xf32, #tpu.memory_space<vmem>>, vector<8x128xf32>,
    } else {
    }
    return
  }
  func.func @transform_0(%arg0: i32, %arg1: i32) -> (i32, i32) {
    %c1_i32 = arith.constant 1 : i32
    %0 = arith.muli %arg0, %c1_i32 : i32
    %1 = arith.addi %0, %arg1 : i32
    %c0_i32 = arith.constant 0 : i32
    %c0_i32_0 = arith.constant 0 : i32
    return %1, %c0_i32 : i32, i32
  }
  func.func @transform_1(%arg0: i32, %arg1: i32) -> (i32, i32) {
    %c1_i32 = arith.constant 1 : i32
    %0 = arith.muli %arg0, %c1_i32 : i32
    %1 = arith.addi %0, %arg1 : i32
    %c0_i32 = arith.constant 0 : i32
    %c0_i32_0 = arith.constant 0 : i32
    return %1, %c0_i32 : i32, i32
  }
  func.func @transform_2(%arg0: i32, %arg1: i32) -> (i32, i32) {
    %c0_i32 = arith.constant 0 : i32
    %c0_i32_0 = arith.constant 0 : i32
    return %arg0, %c0_i32 : i32, i32
  }
}

</mosaic_0001>

<llo_original>
// kernel: tpu_custom_call.1
$region0: #{tpu_custom_call.1}
  #allocation0 [shape = 'u32[]', space=smem, size = 0x4, offset = 0x4, fixed_abs, tag = 'smem constant byte address 0x4 - core index']
  #allocation1 [shape = 'u32[72,128]{1,0:T(1,128)}', space=vmem, size = 0x9000, scoped, tag = 'internal scratch']
  #allocation2 [shape = 'f32[8,128]{1,0:T(8,128)}', space=vmem, size = 0x1000, scoped, tag = 'scratch operand']
  %s0 = inlined_call_operand.hbm [shape: f32[16,128], index: 0, kind: input, shape index: {}]
  %s1 = inlined_call_operand.hbm [shape: f32[16,128], index: 1, kind: input, shape index: {}]
  %s2 = inlined_call_operand.hbm [shape: f32[8,128], index: 2, kind: output, shape index: {}]
  %s3 = sld [smem:[#allocation0]]
  $region34: #{tpu_custom_call.1} parent=0
    _
  %s5 = ssub.s32 1, %s3
  %s6 = scalar_select 0, %s5, %s3
  $region1: #{tpu_custom_call.1} parent=0
    #allocation3 [shape = 'u8[8192]{0}', space=vmem, size = 0x2000, scoped, tag = 'input window, operand 0, single buffered']
    #allocation4 [shape = 's32[1]{0}', space=sflag, size = 0x4, scoped, tag = 'scoped memory for tpu_custom_call.1']
    #allocation5 [shape = 's32[1]{0}', space=sflag, size = 0x4, scoped, tag = 'scoped memory for tpu_custom_call.1']
    #allocation6 [shape = 'u8[8192]{0}', space=vmem, size = 0x2000, scoped, tag = 'input window, operand 1, single buffered']
    #allocation7 [shape = 's32[1]{0}', space=sflag, size = 0x4, scoped, tag = 'scoped memory for tpu_custom_call.1']
    #allocation8 [shape = 'u8[4096]{0}', space=vmem, size = 0x1000, scoped, tag = 'output window, operand 0, single buffered']
    %7 = vsyncpa [#allocation4], 0
    %8 = vsyncpa [#allocation7], 0
    %9 = vsyncpa [#allocation5], 0
    // Predicated region
    $region2: #{tpu_custom_call.1} parent=1 // pred_check
      _
    $region3: #{tpu_custom_call.1} parent=1 // pred_check_branch
      %11 = sbr.rel (0) target = $region5
    $region4: #{tpu_custom_call.1} parent=1 // pred_region
      %s12 = sadd.s32 0, 0
      %s13 = smul.u32 2, %s12
      %15 = vsyncadd [#allocation4], 0
      %s16 = smul.addr %s13, 8
      %s17 = scalar_lea.hbm %s0, %s16
      %s18 = sshll.u32 %s17, 4
      %s19 = int_to_ptr.hbm [resolvable:$true] %s18
      %s20 = sshll.u32 [#allocation3], 4
      %s21 = int_to_ptr.vmem [resolvable:$true] %s20
      %26 = dma.hbm_to_vmem [thread:$0]  %s19, 256, %s21, [#allocation4], 128, 128, 8
    $region5: #{tpu_custom_call.1} parent=1 // pred_fallthru
      _
    // Predicated region
    $region6: #{tpu_custom_call.1} parent=1 // pred_check
      _
    $region7: #{tpu_custom_call.1} parent=1 // pred_check_branch
      %28 = sbr.rel (0) target = $region9
    $region8: #{tpu_custom_call.1} parent=1 // pred_region
      %s29 = sadd.s32 0, 0
      %s30 = smul.u32 2, %s29
      %32 = vsyncadd [#allocation7], 0
      %s33 = smul.addr %s30, 8
      %s34 = scalar_lea.hbm %s1, %s33
      %s35 = sshll.u32 %s34, 4
      %s36 = int_to_ptr.hbm [resolvable:$true] %s35
      %s37 = sshll.u32 [#allocation6], 4
      %s38 = int_to_ptr.vmem [resolvable:$true] %s37
      %43 = dma.hbm_to_vmem [thread:$0]  %s36, 256, %s38, [#allocation7], 128, 128, 8
    $region9: #{tpu_custom_call.1} parent=1 // pred_fallthru
      _
    // Predicated region
    $region10: #{tpu_custom_call.1} parent=1 // pred_check
      _
    $region11: #{tpu_custom_call.1} parent=1 // pred_check_branch
      %45 = sbr.rel (0) target = $region13
    $region12: #{tpu_custom_call.1} parent=1 // pred_region
      %47 = dma.done [#allocation4], 256
    $region13: #{tpu_custom_call.1} parent=1 // pred_fallthru
      _
    // Predicated region
    $region14: #{tpu_custom_call.1} parent=1 // pred_check
      _
    $region15: #{tpu_custom_call.1} parent=1 // pred_check_branch
      %49 = sbr.rel (0) target = $region17
    $region16: #{tpu_custom_call.1} parent=1 // pred_region
      %51 = dma.done [#allocation7], 256
    $region17: #{tpu_custom_call.1} parent=1 // pred_fallthru
      _
    %s52 = sadd.s32 0, 0
    %s53 = smul.u32 2, %s52
    %s54 = sadd.s32 0, 0
    %s55 = smul.u32 2, %s54
    %p56 = scmp.eq.s32.totalorder 0, 0
    // Predicated region
    $region18: #{tpu_custom_call.1} parent=1 // pred_check
      %p57 = pneg %p56
    $region19: #{tpu_custom_call.1} parent=1 // pred_check_branch
      %59 = sbr.rel (%p57) target = $region21
    $region20: #{tpu_custom_call.1} parent=1 // pred_region
      %60 = vst [vmem:[#allocation2] sm:$0xff] 0.0
    $region21: #{tpu_custom_call.1} parent=1 // pred_fallthru
      _
    %v61 = vld [vmem:[#allocation6] sm:$0xff]
    %v62 = vld [vmem:[#allocation6 + $0x8] sm:$0xff]
    %v63 = vld [vmem:[#allocation3] sm:$0xff]
    %v64 = vld [vmem:[#allocation3 + $0x8] sm:$0xff]
    %v65 = vsub.f32 %v61, %v63
    %v66 = vsub.f32 %v62, %v64
    %v67 = vmul.f32 %v65, %v65
    %v68 = vmul.f32 %v66, %v66
    %v69 = vld [vmem:[#allocation2] sm:$0xff]
    %v70 = vadd.f32 %v67, %v68
    %v71 = vadd.f32 %v69, %v70
    %72 = vst [vmem:[#allocation2] sm:$0xff] %v71
    // Predicated region
    $region22: #{tpu_custom_call.1} parent=1 // pred_check
      %p73 = pneg %p56
    $region23: #{tpu_custom_call.1} parent=1 // pred_check_branch
      %75 = sbr.rel (%p73) target = $region25
    $region24: #{tpu_custom_call.1} parent=1 // pred_region
      %v76 = vld [vmem:[#allocation2] sm:$0xff]
      %v77 = vmul.f32 %v76, 0.00048828125
      %78 = vst [vmem:[#allocation8] sm:$0xff] %v77
    $region25: #{tpu_custom_call.1} parent=1 // pred_fallthru
      _
    // Predicated region
    $region26: #{tpu_custom_call.1} parent=1 // pred_check
      _
    $region27: #{tpu_custom_call.1} parent=1 // pred_check_branch
      %80 = sbr.rel (0) target = $region29
    $region28: #{tpu_custom_call.1} parent=1 // pred_region
      %82 = vsyncadd [#allocation5], 0
      %s84 = sshll.u32 [#allocation8], 4
      %s85 = int_to_ptr.vmem [resolvable:$true] %s84
      %s86 = sshll.u32 %s2, 4
      %s87 = int_to_ptr.hbm [resolvable:$true] %s86
      %89 = dma.vmem_to_hbm [thread:$0]  %s85, 128, %s87, [#allocation5]
    $region29: #{tpu_custom_call.1} parent=1 // pred_fallthru
      _
    // Predicated region
    $region30: #{tpu_custom_call.1} parent=1 // pred_check
      _
    $region31: #{tpu_custom_call.1} parent=1 // pred_check_branch
      %91 = sbr.rel (0) target = $region33
    $region32: #{tpu_custom_call.1} parent=1 // pred_region
      %93 = dma.done [#allocation5], 128
    $region33: #{tpu_custom_call.1} parent=1 // pred_fallthru
      _
    %94 = vsyncpa [#allocation4], 1
    %95 = vsyncpa [#allocation7], 1
    %96 = vsyncpa [#allocation5], 1

</llo_original>
